<compile_context>
chip_gen: v7x
topology: tpu7x:2x2x1
jax: 0.10.0
libtpu: 0.0.40
codegen_flags: <defaults>
</compile_context>

<pallas_src>
import functools
import math

import jax
import jax.numpy as jnp
from jax import lax
from jax.experimental import pallas as pl
from jax.experimental.pallas import tpu as pltpu


# ----------------------------- helpers ---------------------------------------


def _round_up(x, m):
    return ((x + m - 1) // m) * m


def _lcm(a, b):
    return a * b // math.gcd(a, b)


_DEF_VMEM_BUDGET = 20 << 20     # target double-buffered working set (bytes)
_N_BIG_STREAMS = 4              # coord_out, coord_gt, valid, loss


def _vmem_budget(user_budget):
    if user_budget is not None:
        return max(int(user_budget), 1 << 16)
    budget = _DEF_VMEM_BUDGET
    try:  # shrink on generations with less physical VMEM (e.g. v7x: 64 MiB/TC)
        phys = pltpu.get_tpu_info().vmem_capacity_bytes
        budget = min(budget, phys // 3)
    except Exception:
        pass
    return max(budget, 1 << 20)


def _choose_tiles(B, Jc, C, itemsize, budget):
    """Pick (tile_b, tile_l) for the (B, J*C) view under a VMEM budget."""
    granule = _lcm(128, C)          # keeps lane-block offsets aligned to C and 128
    tile_b = B if B <= 8 else 8
    sub = _round_up(tile_b, 8)      # VMEM pads every block to 8 sublanes
    per_lane = sub * itemsize * _N_BIG_STREAMS * 2          # dbl-buffered bytes/lane
    lane_cap = max(granule, (budget // per_lane) // granule * granule)

    if Jc <= lane_cap:
        tile_l = Jc                  # full lane extent: no lane masking at all
    else:
        # Aim for >= 4 lane blocks (v7x megacore), capped by the VMEM budget.
        tile_l = max(granule, min(lane_cap, _round_up(pl.cdiv(Jc, 4), granule)))

    if B > 8:
        # Grow the row tile (multiples of 8) so per-step blocks stay big enough
        # to amortize the ~0.35us per-step pipeline overhead, within budget.
        rows = budget // (max(tile_l, 128) * itemsize * _N_BIG_STREAMS * 2)
        tile_b = min(_round_up(B, 8), max(8, (rows // 8) * 8))
        if tile_b >= B and Jc <= tile_l:
            tile_b = max(8, _round_up(pl.cdiv(B, 2), 8))     # keep >= 2 blocks
    elif tile_l == Jc and Jc >= 2 * granule:
        # B cannot be split legally when <= 8; split lanes instead so v7x can
        # still shard the grid across both TensorCores.
        tile_l = _round_up(pl.cdiv(Jc, 2), granule)

    return tile_b, tile_l


# ----------------------------- kernels ---------------------------------------


def _coord_loss_kernel(out_ref, gt_ref, valid_ref, loss_ref):
    # loss = |out - gt| * valid, everything (tile_b, tile_l) lane-dense.
    loss_ref[...] = jnp.abs(out_ref[...] - gt_ref[...]) * valid_ref[...]


def _coord_loss_3d_kernel(C, out_ref, gt_ref, valid_ref, gate_ref, loss_ref):
    l = jnp.abs(out_ref[...] - gt_ref[...]) * valid_ref[...]     # (tile_b, tile_l)
    # Channel index of each lane. Lane-block offsets are always multiples of C,
    # so the local lane index has the same channel phase as the global one.
    lane = lax.broadcasted_iota(jnp.int32, (1, l.shape[-1]), 1)
    is_z = (lane % C) >= 2                                        # (1, tile_l)
    g = gate_ref[...]                                             # (tile_b, 1)
    one = jnp.ones((), dtype=l.dtype)
    loss_ref[...] = (l * jnp.where(is_z, g, one)).astype(loss_ref.dtype)


# ----------------------------- Pallas wrapper ---------------------------------


def _coord_loss_pallas(coord_out, coord_gt, valid, is_3D=None, *,
                       vmem_budget_bytes=None):
    coord_out = jnp.asarray(coord_out)
    dtype = coord_out.dtype
    B, J, C = coord_out.shape
    Jc = J * C

    coord_gt = jnp.asarray(coord_gt, dtype)

    valid = jnp.asarray(valid, dtype)
    if valid.ndim == 2 and valid.shape == (B, J):
        valid = valid[:, :, None]
    if valid.shape != (B, J, C):
        # Materializes a full-size valid (one extra HBM pass).  The default
        # dispatcher prefers the fused XLA path in this case; this branch keeps
        # the Pallas path correct when explicitly requested.
        valid = jnp.broadcast_to(valid, (B, J, C))

    # Free, contiguous reshapes -- no transposes, no pads.
    out2 = coord_out.reshape(B, Jc)
    gt2 = coord_gt.reshape(B, Jc)
    v2 = valid.reshape(B, Jc)

    itemsize = jnp.dtype(dtype).itemsize
    budget = _vmem_budget(vmem_budget_bytes)
    tile_b, tile_l = _choose_tiles(B, Jc, C, itemsize, budget)
    grid = (pl.cdiv(B, tile_b), pl.cdiv(Jc, tile_l))

    big_spec = pl.BlockSpec((tile_b, tile_l), lambda i, j: (i, j))
    out_shape = jax.ShapeDtypeStruct((B, Jc), dtype)

    # Explicit scoped-VMEM limit: account for the 8-sublane / 128-lane padding
    # of every (double-buffered) block so larger tiles compile on all gens.
    sub = _round_up(tile_b, 8)
    block_bytes = sub * _round_up(tile_l, 128) * itemsize
    working = block_bytes * _N_BIG_STREAMS * 2 + sub * 128 * itemsize * 4
    vmem_limit = int(min(max(working * 3 // 2, 16 << 20), 48 << 20))
    cparams = pltpu.CompilerParams(
        dimension_semantics=("parallel", "parallel"),
        vmem_limit_bytes=vmem_limit)

    if is_3D is None:
        res = pl.pallas_call(
            _coord_loss_kernel,
            out_shape=out_shape,
            grid=grid,
            in_specs=[big_spec, big_spec, big_spec],
            out_specs=big_spec,
            compiler_params=cparams,
        )(out2, gt2, v2)
    else:
        gate = jnp.asarray(is_3D).astype(dtype).reshape(B, 1)
        gate_spec = pl.BlockSpec((tile_b, 1), lambda i, j: (i, 0))
        res = pl.pallas_call(
            functools.partial(_coord_loss_3d_kernel, C),
            out_shape=out_shape,
            grid=grid,
            in_specs=[big_spec, big_spec, big_spec, gate_spec],
            out_specs=big_spec,
            compiler_params=cparams,
        )(out2, gt2, v2, gate)

    return res.reshape(B, J, C)


# ----------------------------- XLA fallback & dispatcher ----------------------


def _coord_loss_xla(coord_out, coord_gt, valid, is_3D=None):
    # Single fused elementwise expression: mask-multiply instead of concatenate
    # so the output is written exactly once.
    loss = jnp.abs(coord_out - coord_gt) * valid
    if is_3D is not None:
        C = coord_out.shape[-1]
        ch_is_z = (jnp.arange(C) >= 2)[None, None, :]
        gate = jnp.asarray(is_3D).astype(loss.dtype)[:, None, None]
        loss = loss * jnp.where(ch_is_z, gate, jnp.ones_like(gate))
    return loss


# Crossover vs a single fused XLA kernel is ~1e5 elements once the wrapper has
# no relayout work.  TODO(synk): re-measure the crossover with xprof (min-of-N)
# per TPU generation and tune this constant.
_MIN_PALLAS_ELEMS = 1 << 17


def coord_loss(coord_out, coord_gt, valid, is_3D=None, *, use_pallas=None,
               vmem_budget_bytes=None):
    """JAX/Pallas implementation of CoordLoss.forward."""
    coord_out = jnp.asarray(coord_out)
    coord_gt = jnp.asarray(coord_gt, coord_out.dtype)
    valid_arr = jnp.asarray(valid, coord_out.dtype)
    if use_pallas is None:
        # Use Pallas only when it can match the fused-XLA HBM traffic: big
        # enough to amortize the call/step overhead AND no wrapper-side
        # materialization of `valid` needed (valid already per-channel).
        use_pallas = (coord_out.size >= _MIN_PALLAS_ELEMS
                      and valid_arr.shape == coord_out.shape)
    if not use_pallas:
        return _coord_loss_xla(coord_out, coord_gt, valid_arr, is_3D)
    return _coord_loss_pallas(coord_out, coord_gt, valid_arr, is_3D,
                              vmem_budget_bytes=vmem_budget_bytes)


# ----------------------------- reference / test -------------------------------


def _reference(coord_out, coord_gt, valid, is_3D=None):
    loss = jnp.abs(coord_out - coord_gt) * valid
    if is_3D is not None:
        gate = jnp.asarray(is_3D).astype(loss.dtype)[:, None, None]
        loss = jnp.concatenate([loss[:, :, :2], loss[:, :, 2:] * gate], axis=2)
    return loss


if __name__ == "__main__":
    ks = jax.random.split(jax.random.PRNGKey(0), 16)

    def make(B, J, C, valid_last, i):
        co = jax.random.normal(ks[i], (B, J, C), dtype=jnp.float32)
        cg = jax.random.normal(ks[i + 1], (B, J, C), dtype=jnp.float32)
        v = (jax.random.uniform(ks[i + 2], (B, J, valid_last)) > 0.3
             ).astype(jnp.float32)
        is3d = (jax.random.uniform(ks[i + 3], (B,)) > 0.5).astype(jnp.float32)
        return co, cg, v, is3d

    # 1) Small shape -> dispatcher uses the fused XLA path (with & without gate).
    co, cg, v, is3d = make(2, 8, 3, 1, 0)
    r = coord_loss(co, cg, v, is3d)
    jax.block_until_ready(r)
    assert jnp.allclose(r, _reference(co, cg, v, is3d), atol=1e-6)
    r = coord_loss(co, cg, v)
    jax.block_until_ready(r)
    assert jnp.allclose(r, _reference(co, cg, v), atol=1e-6)

    # 2) Pallas path, per-channel valid, free reshapes only (2-way lane grid).
    co, cg, v, is3d = make(2, 256, 3, 3, 4)
    r = coord_loss(co, cg, v, is3d, use_pallas=True)
    jax.block_until_ready(r)
    assert jnp.allclose(r, _reference(co, cg, v, is3d), atol=1e-6)
    r = coord_loss(co, cg, v, use_pallas=True)
    jax.block_until_ready(r)
    assert jnp.allclose(r, _reference(co, cg, v), atol=1e-6)

    # 3) Pallas path with a tiny VMEM budget to force a 2-D grid whose tail
    #    blocks are partially out of range (rows 12..15, lanes 1500..1535).
    co, cg, v, is3d = make(12, 500, 3, 3, 8)
    r = coord_loss(co, cg, v, is3d, use_pallas=True, vmem_budget_bytes=150_000)
    jax.block_until_ready(r)
    assert jnp.allclose(r, _reference(co, cg, v, is3d), atol=1e-6)

    # 4) Pallas path forced with a (B, J, 1) valid (exercises the broadcast path).
    co, cg, v, is3d = make(12, 500, 3, 1, 12)
    r = coord_loss(co, cg, v, use_pallas=True, vmem_budget_bytes=150_000)
    jax.block_until_ready(r)
    assert jnp.allclose(r, _reference(co, cg, v), atol=1e-6)

    print("KERNEL_OK")
</pallas_src>

<mosaic_0001>
module attributes {stable_mosaic.version = 11 : i64} {
  func.func @_coord_loss_3d_kernel(%arg0: i32, %arg1: i32, %arg2: memref<2x384xf32, #tpu.memory_space<vmem>>, %arg3: memref<2x384xf32, #tpu.memory_space<vmem>>, %arg4: memref<2x384xf32, #tpu.memory_space<vmem>>, %arg5: memref<2x1xf32, #tpu.memory_space<vmem>>, %arg6: memref<2x384xf32, #tpu.memory_space<vmem>>) attributes {dimension_semantics = [#tpu.dimension_semantics<parallel>, #tpu.dimension_semantics<parallel>], iteration_bounds = array<i64: 1, 2>, scalar_prefetch = 0 : i64, scratch_operands = 0 : i64, tpu.core_type = #tpu.core_type<tc>, window_params = [{transform_indices = @transform_0, window_bounds = array<i64: 2, 384>}, {transform_indices = @transform_1, window_bounds = array<i64: 2, 384>}, {transform_indices = @transform_2, window_bounds = array<i64: 2, 384>}, {transform_indices = @transform_3, window_bounds = array<i64: 2, 1>}, {transform_indices = @transform_4, window_bounds = array<i64: 2, 384>}]} {
    %c0 = arith.constant 0 : index
    %c0_0 = arith.constant 0 : index
    %0 = vector.load %arg2[%c0, %c0_0] : memref<2x384xf32, #tpu.memory_space<vmem>>, vector<2x384xf32>
    %c0_1 = arith.constant 0 : index
    %c0_2 = arith.constant 0 : index
    %1 = vector.load %arg3[%c0_1, %c0_2] : memref<2x384xf32, #tpu.memory_space<vmem>>, vector<2x384xf32>
    %2 = arith.subf %0, %1 : vector<2x384xf32>
    %3 = math.absf %2 : vector<2x384xf32>
    %c0_3 = arith.constant 0 : index
    %c0_4 = arith.constant 0 : index
    %4 = vector.load %arg4[%c0_3, %c0_4] : memref<2x384xf32, #tpu.memory_space<vmem>>, vector<2x384xf32>
    %5 = arith.mulf %3, %4 : vector<2x384xf32>
    %6 = tpu.iota {dimensions = array<i32: 1>} : vector<1x384xi32>
    %c3_i32 = arith.constant 3 : i32
    %c0_i32 = arith.constant 0 : i32
    %7 = arith.cmpi eq, %c3_i32, %c0_i32 : i32
    %c1_i32 = arith.constant 1 : i32
    %8 = arith.select %7, %c1_i32, %c3_i32 : i32
    %9 = vector.broadcast %8 : i32 to vector<1x384xi32>
    %10 = arith.remsi %6, %9 : vector<1x384xi32>
    %c0_i32_5 = arith.constant 0 : i32
    %11 = vector.broadcast %c0_i32_5 : i32 to vector<1x384xi32>
    %12 = arith.cmpi ne, %10, %11 : vector<1x384xi32>
    %c0_i32_6 = arith.constant 0 : i32
    %13 = vector.broadcast %c0_i32_6 : i32 to vector<1x384xi32>
    %14 = arith.cmpi slt, %10, %13 : vector<1x384xi32>
    %c0_i32_7 = arith.constant 0 : i32
    %15 = arith.cmpi slt, %8, %c0_i32_7 : i32
    %16 = vector.broadcast %15 : i1 to vector<1x384xi1>
    %17 = vector.broadcast %16 : vector<1x384xi1> to vector<1x384xi1>
    %18 = arith.xori %14, %17 : vector<1x384xi1>
    %19 = arith.andi %18, %12 : vector<1x384xi1>
    %20 = vector.broadcast %8 : i32 to vector<1x384xi32>
    %21 = arith.addi %10, %20 : vector<1x384xi32>
    %22 = arith.select %19, %21, %10 : vector<1x384xi1>, vector<1x384xi32>
    %c2_i32 = arith.constant 2 : i32
    %23 = vector.broadcast %c2_i32 : i32 to vector<1x384xi32>
    %24 = arith.cmpi sge, %22, %23 : vector<1x384xi32>
    %c0_8 = arith.constant 0 : index
    %c0_9 = arith.constant 0 : index
    %25 = vector.load %arg5[%c0_8, %c0_9] : memref<2x1xf32, #tpu.memory_space<vmem>>, vector<2x1xf32>
    %cst = arith.constant 1.000000e+00 : f32
    %26 = vector.shape_cast %24 : vector<1x384xi1> to vector<1x384xi1>
    %27 = vector.broadcast %26 : vector<1x384xi1> to vector<2x384xi1>
    %28 = vector.shape_cast %25 : vector<2x1xf32> to vector<2x1xf32>
    %29 = vector.broadcast %28 : vector<2x1xf32> to vector<2x384xf32>
    %30 = vector.broadcast %cst : f32 to vector<2x384xf32>
    %31 = arith.select %27, %29, %30 : vector<2x384xi1>, vector<2x384xf32>
    %32 = arith.mulf %5, %31 : vector<2x384xf32>
    %c0_10 = arith.constant 0 : index
    %c0_11 = arith.constant 0 : index
    %33 = vector.load %arg6[%c0_10, %c0_11] : memref<2x384xf32, #tpu.memory_space<vmem>>, vector<2x384xf32>
    tpu.vector_store %arg6[%c0_10, %c0_11], %32 {strides = array<i32>} : memref<2x384xf32, #tpu.memory_space<vmem>>, vector<2x384xf32>,
    return
  }
  func.func @transform_0(%arg0: i32, %arg1: i32) -> (i32, i32) {
    %c0_i32 = arith.constant 0 : i32
    return %arg0, %arg1 : i32, i32
  }
  func.func @transform_1(%arg0: i32, %arg1: i32) -> (i32, i32) {
    %c0_i32 = arith.constant 0 : i32
    return %arg0, %arg1 : i32, i32
  }
  func.func @transform_2(%arg0: i32, %arg1: i32) -> (i32, i32) {
    %c0_i32 = arith.constant 0 : i32
    return %arg0, %arg1 : i32, i32
  }
  func.func @transform_3(%arg0: i32, %arg1: i32) -> (i32, i32) {
    %c0_i32 = arith.constant 0 : i32
    %c0_i32_0 = arith.constant 0 : i32
    return %arg0, %c0_i32 : i32, i32
  }
  func.func @transform_4(%arg0: i32, %arg1: i32) -> (i32, i32) {
    %c0_i32 = arith.constant 0 : i32
    return %arg0, %arg1 : i32, i32
  }
}

</mosaic_0001>

<llo_original>
// kernel: tpu_custom_call.1
$region0: #{tpu_custom_call.1}
  #allocation0 [shape = 'u32[]', space=smem, size = 0x4, offset = 0x4, fixed_abs, tag = 'smem constant byte address 0x4 - core index']
  #allocation1 [shape = 'u32[144,128]{1,0:T(1,128)}', space=vmem, size = 0x12000, scoped, tag = 'internal scratch']
  %s0 = inlined_call_operand.hbm [shape: f32[2,768], index: 0, kind: input, shape index: {}]
  %s1 = inlined_call_operand.hbm [shape: f32[2,768], index: 1, kind: input, shape index: {}]
  %s2 = inlined_call_operand.hbm [shape: f32[2,768], index: 2, kind: input, shape index: {}]
  %s3 = inlined_call_operand.vmem [shape: f32[2,1], index: 3, kind: input, shape index: {}]
  %s4 = inlined_call_operand.hbm [shape: f32[2,768], index: 4, kind: output, shape index: {}]
  %s5 = sld [smem:[#allocation0]]
  $region61: #{tpu_custom_call.1} parent=0
    _
  %s7 = ssub.s32 1, %s5
  %s8 = scalar_select 0, %s7, %s5
  $region1: #{tpu_custom_call.1} parent=0
    #allocation2 [shape = 'u8[6144]{0}', space=vmem, size = 0x1800, scoped, tag = 'input window, operand 0']
    #allocation3 [shape = 's32[2]{0}', space=sflag, size = 0x8, scoped, tag = 'scoped memory for tpu_custom_call.1']
    #allocation4 [shape = 's32[2]{0}', space=sflag, size = 0x8, scoped, tag = 'scoped memory for tpu_custom_call.1']
    #allocation5 [shape = 'u8[6144]{0}', space=vmem, size = 0x1800, scoped, tag = 'input window, operand 1']
    #allocation6 [shape = 's32[2]{0}', space=sflag, size = 0x8, scoped, tag = 'scoped memory for tpu_custom_call.1']
    #allocation7 [shape = 'u8[6144]{0}', space=vmem, size = 0x1800, scoped, tag = 'input window, operand 2']
    #allocation8 [shape = 'u8[6144]{0}', space=vmem, size = 0x1800, scoped, tag = 'output window, operand 0']
    %9 = vsyncpa [#allocation3], 0
    %s10 = scalar_lea.sflag [#allocation3], 1
    %11 = vsyncpa %s10, 0
    %12 = vsyncpa [#allocation6], 0
    %s13 = scalar_lea.sflag [#allocation6], 1
    %14 = vsyncpa %s13, 0
    %15 = vsyncpa [#allocation4], 0
    %s16 = scalar_lea.sflag [#allocation4], 1
    %17 = vsyncpa %s16, 0
    loop: start=0, step=1, limit=4
    $region2: #{tpu_custom_call.1} parent=1 // loop_pre_header
      _
    $region3: #{tpu_custom_call.1} parent=1 // loop_header
      %s19 = sphi 0, %s23
      %p20 = scmp.ge.s32.totalorder %s19, 4
      %s26 = sphi 0, %s38
      %s27 = sphi 0, %s34
      %s28 = sphi 0, %s26
      %s29 = sphi 0, %s27
      %s30 = sphi 0, %s28
      %s31 = sphi 0, %s29
      %s43 = sphi 0, %s45
      %s46 = sphi 0, %s43
      %s47 = sphi 0, %s46
      %s63 = sphi 0, %s47
      %s71 = sphi 0, %s73
      %s74 = sphi 0, %s71
      %s75 = sphi 0, %s74
      %s91 = sphi 0, %s75
      %s99 = sphi 0, %s101
      %s102 = sphi 0, %s99
      %s103 = sphi 0, %s102
      %s119 = sphi 0, %s103
      %s125 = sphi 0, %s127
      %s128 = sphi 0, %s125
      %s129 = sphi 0, %s128
      %s145 = sphi 0, %s129
      %s153 = sphi 0, %s155
      %s156 = sphi 0, %s153
      %s157 = sphi 0, %s156
      %s173 = sphi 0, %s157
    $region4: #{tpu_custom_call.1} parent=1 // loop_header_branch
      %22 = sbr.rel (%p20) target = $region8
    $region5: #{tpu_custom_call.1} parent=1 // loop_body
      %s24 = ssub.s32 %s19, 1
      %s25 = ssub.s32 %s19, 2
      %s32 = sadd.s32 1, %s27
      %p33 = scmp.ge.s32.totalorder %s32, 2
      %s34 = scalar_select %p33, 0, %s32
      %s35 = sadd.s32 1, %s26
      %s36 = scalar_select %p33, %s35, %s26
      %p37 = scmp.ge.s32.totalorder %s36, 1
      %s38 = scalar_select %p37, 0, %s36
      %s39 = ssub.s32 %s26, %s38
      %s40 = ssub.s32 %s27, %s34
      %s41 = sor.u32 %s39, %s40
      %p42 = scmp.eq.s32.totalorder %s41, 0
      %s44 = sadd.s32 %s43, 1
      %s45 = scalar_select %p42, %s43, %s44
      %p48 = pneg %p42
      %p49 = scmp.eq.s32.totalorder %s19, 1
      %p50 = por %p48, %p49
      %p51 = scmp.ne.s32.totalorder %s43, %s46
      %p52 = scmp.eq.s32.totalorder %s19, 0
      %p53 = por %p51, %p52
      %p54 = scmp.ne.s32.totalorder %s43, %s46
      %p55 = scmp.eq.s32.totalorder %s24, 1
      %p56 = por %p54, %p55
      %p57 = scmp.ne.s32.totalorder %s46, %s47
      %p58 = scmp.eq.s32.totalorder %s24, 0
      %p59 = por %p57, %p58
      %p60 = scmp.ne.s32.totalorder %s46, %s47
      %p61 = scmp.eq.s32.totalorder %s25, 1
      %p62 = por %p60, %p61
      %p64 = scmp.ne.s32.totalorder %s47, %s63
      %p65 = scmp.eq.s32.totalorder %s25, 0
      %p66 = por %p64, %p65
      %s67 = ssub.s32 %s26, %s38
      %s68 = ssub.s32 %s27, %s34
      %s69 = sor.u32 %s67, %s68
      %p70 = scmp.eq.s32.totalorder %s69, 0
      %s72 = sadd.s32 %s71, 1
      %s73 = scalar_select %p70, %s71, %s72
      %p76 = pneg %p70
      %p77 = scmp.eq.s32.totalorder %s19, 1
      %p78 = por %p76, %p77
      %p79 = scmp.ne.s32.totalorder %s71, %s74
      %p80 = scmp.eq.s32.totalorder %s19, 0
      %p81 = por %p79, %p80
      %p82 = scmp.ne.s32.totalorder %s71, %s74
      %p83 = scmp.eq.s32.totalorder %s24, 1
      %p84 = por %p82, %p83
      %p85 = scmp.ne.s32.totalorder %s74, %s75
      %p86 = scmp.eq.s32.totalorder %s24, 0
      %p87 = por %p85, %p86
      %p88 = scmp.ne.s32.totalorder %s74, %s75
      %p89 = scmp.eq.s32.totalorder %s25, 1
      %p90 = por %p88, %p89
      %p92 = scmp.ne.s32.totalorder %s75, %s91
      %p93 = scmp.eq.s32.totalorder %s25, 0
      %p94 = por %p92, %p93
      %s95 = ssub.s32 %s26, %s38
      %s96 = ssub.s32 %s27, %s34
      %s97 = sor.u32 %s95, %s96
      %p98 = scmp.eq.s32.totalorder %s97, 0
      %s100 = sadd.s32 %s99, 1
      %s101 = scalar_select %p98, %s99, %s100
      %p104 = pneg %p98
      %p105 = scmp.eq.s32.totalorder %s19, 1
      %p106 = por %p104, %p105
      %p107 = scmp.ne.s32.totalorder %s99, %s102
      %p108 = scmp.eq.s32.totalorder %s19, 0
      %p109 = por %p107, %p108
      %p110 = scmp.ne.s32.totalorder %s99, %s102
      %p111 = scmp.eq.s32.totalorder %s24, 1
      %p112 = por %p110, %p111
      %p113 = scmp.ne.s32.totalorder %s102, %s103
      %p114 = scmp.eq.s32.totalorder %s24, 0
      %p115 = por %p113, %p114
      %p116 = scmp.ne.s32.totalorder %s102, %s103
      %p117 = scmp.eq.s32.totalorder %s25, 1
      %p118 = por %p116, %p117
      %p120 = scmp.ne.s32.totalorder %s103, %s119
      %p121 = scmp.eq.s32.totalorder %s25, 0
      %p122 = por %p120, %p121
      %s123 = ssub.s32 %s26, %s38
      %p124 = scmp.eq.s32.totalorder %s123, 0
      %s126 = sadd.s32 %s125, 1
      %s127 = scalar_select %p124, %s125, %s126
      %p130 = pneg %p124
      %p131 = scmp.eq.s32.totalorder %s19, 1
      %p132 = por %p130, %p131
      %p133 = scmp.ne.s32.totalorder %s125, %s128
      %p134 = scmp.eq.s32.totalorder %s19, 0
      %p135 = por %p133, %p134
      %p136 = scmp.ne.s32.totalorder %s125, %s128
      %p137 = scmp.eq.s32.totalorder %s24, 1
      %p138 = por %p136, %p137
      %p139 = scmp.ne.s32.totalorder %s128, %s129
      %p140 = scmp.eq.s32.totalorder %s24, 0
      %p141 = por %p139, %p140
      %p142 = scmp.ne.s32.totalorder %s128, %s129
      %p143 = scmp.eq.s32.totalorder %s25, 1
      %p144 = por %p142, %p143
      %p146 = scmp.ne.s32.totalorder %s129, %s145
      %p147 = scmp.eq.s32.totalorder %s25, 0
      %p148 = por %p146, %p147
      %s149 = ssub.s32 %s26, %s38
      %s150 = ssub.s32 %s27, %s34
      %s151 = sor.u32 %s149, %s150
      %p152 = scmp.eq.s32.totalorder %s151, 0
      %s154 = sadd.s32 %s153, 1
      %s155 = scalar_select %p152, %s153, %s154
      %p158 = pneg %p152
      %p159 = scmp.eq.s32.totalorder %s19, 1
      %p160 = por %p158, %p159
      %p161 = scmp.ne.s32.totalorder %s153, %s156
      %p162 = scmp.eq.s32.totalorder %s19, 0
      %p163 = por %p161, %p162
      %p164 = scmp.ne.s32.totalorder %s153, %s156
      %p165 = scmp.eq.s32.totalorder %s24, 1
      %p166 = por %p164, %p165
      %p167 = scmp.ne.s32.totalorder %s156, %s157
      %p168 = scmp.eq.s32.totalorder %s24, 0
      %p169 = por %p167, %p168
      %p170 = scmp.ne.s32.totalorder %s156, %s157
      %p171 = scmp.eq.s32.totalorder %s25, 1
      %p172 = por %p170, %p171
      %p174 = scmp.ne.s32.totalorder %s157, %s173
      %p175 = scmp.eq.s32.totalorder %s25, 0
      %p176 = por %p174, %p175
      %p177 = scmp.le.s32.totalorder 1, %s19
      %p178 = scmp.lt.s32.totalorder %s19, 3
      %p179 = pnand %p177, %p178
      %p180 = pneg %p179
      // Predicated region
      $region9: #{tpu_custom_call.1} parent=5 // pred_check
        _
      $region10: #{tpu_custom_call.1} parent=5 // pred_check_branch
        %182 = sbr.rel (%p179) target = $region12
      $region11: #{tpu_custom_call.1} parent=5 // pred_region
        %s183 = ssub.s32 %s19, 1
        // Predicated region
        $region13: #{tpu_custom_call.1} parent=11 // pred_check
          %p184 = pneg %p141
        $region14: #{tpu_custom_call.1} parent=11 // pred_check_branch
          %186 = sbr.rel (%p184) target = $region16
        $region15: #{tpu_custom_call.1} parent=11 // pred_region
          %p187 = scmp.lt.s32.totalorder %s28, 0
          %s188 = scalar_select %p187, %s28, 0
          %s189 = smul.addr %s188, 2
          %s190 = scalar_lea.vmem %s3, %s189
        $region16: #{tpu_custom_call.1} parent=11 // pred_fallthru
          _
      $region12: #{tpu_custom_call.1} parent=5 // pred_fallthru
        _
      %p191 = scmp.lt.s32.totalorder %s19, 2
      // Predicated region
      $region17: #{tpu_custom_call.1} parent=5 // pred_check
        %p192 = pneg %p191
      $region18: #{tpu_custom_call.1} parent=5 // pred_check_branch
        %194 = sbr.rel (%p192) target = $region20
      $region19: #{tpu_custom_call.1} parent=5 // pred_region
        // Predicated region
        $region21: #{tpu_custom_call.1} parent=19 // pred_check
          %p195 = pneg %p53
        $region22: #{tpu_custom_call.1} parent=19 // pred_check_branch
          %197 = sbr.rel (%p195) target = $region24
        $region23: #{tpu_custom_call.1} parent=19 // pred_region
          %s198 = sand.u32 %s43, 1
          %s199 = scalar_lea.sflag [#allocation3], %s198
          %s200 = sand.u32 %s43, 1
          %s201 = smul.addr %s200, 6
          %s202 = scalar_lea.vmem [#allocation2], %s201
          %s203 = smul.u32 3, %s27
          %s205 = ssub.s32 96, 96
          %206 = vsyncadd %s199, %s205
          %s207 = smul.addr %s26, 6
          %s208 = sadd.s32 %s203, %s207
          %s209 = smul.addr %s208, 32
          %s210 = scalar_lea.hbm %s0, %s209
          %s212 = sshll.u32 %s202, 4
          %s213 = int_to_ptr.vmem [resolvable:$true] %s212
          %215 = dma.hbm_to_vmem [thread:$0]  %s210, 96, %s213, %s199
        $region24: #{tpu_custom_call.1} parent=19 // pred_fallthru
          _
        // Predicated region
        $region25: #{tpu_custom_call.1} parent=19 // pred_check
          %p216 = pneg %p81
        $region26: #{tpu_custom_call.1} parent=19 // pred_check_branch
          %218 = sbr.rel (%p216) target = $region28
        $region27: #{tpu_custom_call.1} parent=19 // pred_region
          %s219 = sand.u32 %s19, 1
          %s220 = scalar_lea.sflag [#allocation6], %s219
          %s221 = sand.u32 %s71, 1
          %s222 = smul.addr %s221, 6
          %s223 = scalar_lea.vmem [#allocation5], %s222
          %s224 = smul.u32 3, %s27
          %s226 = ssub.s32 96, 96
          %227 = vsyncadd %s220, %s226
          %s228 = smul.addr %s26, 6
          %s229 = sadd.s32 %s224, %s228
          %s230 = smul.addr %s229, 32
          %s231 = scalar_lea.hbm %s1, %s230
          %s233 = sshll.u32 %s223, 4
          %s234 = int_to_ptr.vmem [resolvable:$true] %s233
          %236 = dma.hbm_to_vmem [thread:$0]  %s231, 96, %s234, %s220
        $region28: #{tpu_custom_call.1} parent=19 // pred_fallthru
          _
        // Predicated region
        $region29: #{tpu_custom_call.1} parent=19 // pred_check
          %p237 = pneg %p109
        $region30: #{tpu_custom_call.1} parent=19 // pred_check_branch
          %239 = sbr.rel (%p237) target = $region32
        $region31: #{tpu_custom_call.1} parent=19 // pred_region
          %s240 = sand.u32 %s19, 1
          %s241 = scalar_lea.sflag [#allocation6], %s240
          %s242 = sand.u32 %s99, 1
          %s243 = smul.addr %s242, 6
          %s244 = scalar_lea.vmem [#allocation7], %s243
          %s245 = smul.u32 3, %s27
          %s247 = ssub.s32 96, 96
          %248 = vsyncadd %s241, %s247
          %s249 = smul.addr %s26, 6
          %s250 = sadd.s32 %s245, %s249
          %s251 = smul.addr %s250, 32
          %s252 = scalar_lea.hbm %s2, %s251
          %s254 = sshll.u32 %s244, 4
          %s255 = int_to_ptr.vmem [resolvable:$true] %s254
          %257 = dma.hbm_to_vmem [thread:$0]  %s252, 96, %s255, %s241
        $region32: #{tpu_custom_call.1} parent=19 // pred_fallthru
          _
      $region20: #{tpu_custom_call.1} parent=5 // pred_fallthru
        _
      %p258 = scmp.le.s32.totalorder 1, %s19
      %p259 = scmp.lt.s32.totalorder %s19, 3
      %p260 = pnand %p258, %p259
      %p261 = pneg %p260
      // Predicated region
      $region33: #{tpu_custom_call.1} parent=5 // pred_check
        _
      $region34: #{tpu_custom_call.1} parent=5 // pred_check_branch
        %263 = sbr.rel (%p260) target = $region36
      $region35: #{tpu_custom_call.1} parent=5 // pred_region
        %s264 = ssub.s32 %s19, 1
        %s265 = sand.u32 %s46, 1
        %s266 = scalar_lea.sflag [#allocation3], %s265
        %s267 = sand.u32 %s46, 1
        %s268 = smul.addr %s267, 6
        %s269 = scalar_lea.vmem [#allocation2], %s268
        // Predicated region
        $region37: #{tpu_custom_call.1} parent=35 // pred_check
          %p270 = pneg %p59
        $region38: #{tpu_custom_call.1} parent=35 // pred_check_branch
          %272 = sbr.rel (%p270) target = $region40
        $region39: #{tpu_custom_call.1} parent=35 // pred_region
          %273 = dma.done %s266, 96
        $region40: #{tpu_custom_call.1} parent=35 // pred_fallthru
          _
        %s274 = sand.u32 %s24, 1
        %s275 = scalar_lea.sflag [#allocation6], %s274
        %s276 = sand.u32 %s74, 1
        %s277 = smul.addr %s276, 6
        %s278 = scalar_lea.vmem [#allocation5], %s277
        // Predicated region
        $region41: #{tpu_custom_call.1} parent=35 // pred_check
          %p279 = pneg %p87
        $region42: #{tpu_custom_call.1} parent=35 // pred_check_branch
          %281 = sbr.rel (%p279) target = $region44
        $region43: #{tpu_custom_call.1} parent=35 // pred_region
          %282 = dma.done %s275, 96
        $region44: #{tpu_custom_call.1} parent=35 // pred_fallthru
          _
        %s283 = sand.u32 %s24, 1
        %s284 = scalar_lea.sflag [#allocation6], %s283
        %s285 = sand.u32 %s102, 1
        %s286 = smul.addr %s285, 6
        %s287 = scalar_lea.vmem [#allocation7], %s286
        // Predicated region
        $region45: #{tpu_custom_call.1} parent=35 // pred_check
          %p288 = pneg %p115
        $region46: #{tpu_custom_call.1} parent=35 // pred_check_branch
          %290 = sbr.rel (%p288) target = $region48
        $region47: #{tpu_custom_call.1} parent=35 // pred_region
          %291 = dma.done %s284, 96
        $region48: #{tpu_custom_call.1} parent=35 // pred_fallthru
          _
        %s292 = sand.u32 %s46, 1
        %s293 = scalar_lea.sflag [#allocation3], %s292
        %s294 = sand.u32 %s46, 1
        %s295 = smul.addr %s294, 6
        %s296 = scalar_lea.vmem [#allocation2], %s295
        %p297 = pneg %p59
        %p298 = pneg %p56
        %s299 = sand.u32 %s24, 1
        %s300 = scalar_lea.sflag [#allocation6], %s299
        %s301 = sand.u32 %s74, 1
        %s302 = smul.addr %s301, 6
        %s303 = scalar_lea.vmem [#allocation5], %s302
        %p304 = pneg %p87
        %p305 = pneg %p84
        %s306 = sand.u32 %s24, 1
        %s307 = scalar_lea.sflag [#allocation6], %s306
        %s308 = sand.u32 %s102, 1
        %s309 = smul.addr %s308, 6
        %s310 = scalar_lea.vmem [#allocation7], %s309
        %p311 = pneg %p115
        %p312 = pneg %p112
        %p313 = scmp.lt.s32.totalorder %s28, 0
        %s314 = scalar_select %p313, %s28, 0
        %s315 = smul.addr %s314, 2
        %s316 = scalar_lea.vmem %s3, %s315
        %p317 = pneg %p141
        %p318 = pneg %p138
        %p319 = pneg %p169
        %p320 = pneg %p166
        %s321 = sand.u32 %s156, 1
        %s322 = scalar_lea.sflag [#allocation4], %s321
        %s323 = sand.u32 %s156, 1
        %s324 = smul.addr %s323, 6
        %s325 = scalar_lea.vmem [#allocation8], %s324
        %s326 = smul.u32 3, %s29
        %s327 = smul.u32 3, %s29
        %s328 = smul.u32 3, %s29
        %p329 = scmp.lt.s32.totalorder %s28, 0
        %s330 = scalar_select %p329, %s28, 0
        %s331 = smul.addr %s330, 2
        %s332 = scalar_lea.vmem %s3, %s331
        %s333 = smul.u32 3, %s29
        %v334 = vld [vmem:[%s269] sm:$0x3f]
        %v335 = vld [vmem:[%s278] sm:$0x3f]
        %v336 = vsub.f32 %v334, %v335
        %v337 = vand.u32 2147483647, %v336
        %v338 = vld [vmem:[%s287] sm:$0x3f]
        %v339 = vmul.f32 %v337, %v338
        %v340 = vlaneseq
        %v341 = vand.u32 %v340, 127
        %v342 = vadd.s32 %v341, 128
        %v343 = vadd.s32 %v341, 256
        %vm344 = vcmp.lt.s32.totalorder %v341, 0
        %v345 = vsub.s32 0, %v341
        %v346 = vsel %vm344, %v345, %v341
        %v347 = vmul.u32.u64.compose %v346, 2863311531
        %v348 = vextract.low.u32 %v347
        %v349 = vextract.high.u32 %v347
        %v350 = vshrl.u32 %v349, 1
        %v351 = vmul.u32 %v350, 3
        %v352 = vsub.s32 %v346, %v351
        %v353 = vsub.s32 0, %v352
        %v354 = vsel %vm344, %v353, %v352
        %vm355 = vcmp.lt.s32.totalorder %v342, 0
        %v356 = vsub.s32 0, %v342
        %v357 = vsel %vm355, %v356, %v342
        %v358 = vmul.u32.u64.compose %v357, 2863311531
        %v359 = vextract.low.u32 %v358
        %v360 = vextract.high.u32 %v358
        %v361 = vshrl.u32 %v360, 1
        %v362 = vmul.u32 %v361, 3
        %v363 = vsub.s32 %v357, %v362
        %v364 = vsub.s32 0, %v363
        %v365 = vsel %vm355, %v364, %v363
        %vm366 = vcmp.lt.s32.totalorder %v343, 0
        %v367 = vsub.s32 0, %v343
        %v368 = vsel %vm366, %v367, %v343
        %v369 = vmul.u32.u64.compose %v368, 2863311531
        %v370 = vextract.low.u32 %v369
        %v371 = vextract.high.u32 %v369
        %v372 = vshrl.u32 %v371, 1
        %v373 = vmul.u32 %v372, 3
        %v374 = vsub.s32 %v368, %v373
        %v375 = vsub.s32 0, %v374
        %v376 = vsel %vm366, %v375, %v374
        %vm377 = vcmp.ne.s32.totalorder %v354, 0
        %vm378 = vcmp.ne.s32.totalorder %v365, 0
        %vm379 = vcmp.ne.s32.totalorder %v376, 0
        %vm380 = vcmp.lt.s32.totalorder %v354, 0
        %vm381 = vcmp.lt.s32.totalorder %v365, 0
        %vm382 = vcmp.lt.s32.totalorder %v376, 0
        %vm383 = vmand %vm380, %vm377
        %vm384 = vmand %vm381, %vm378
        %vm385 = vmand %vm382, %vm379
        %v386 = vadd.s32 %v354, 3
        %v387 = vadd.s32 %v365, 3
        %v388 = vadd.s32 %v376, 3
        %v389 = vsel %vm383, %v386, %v354
        %v390 = vsel %vm384, %v387, %v365
        %v391 = vsel %vm385, %v388, %v376
        %vm392 = vcmp.ge.s32.totalorder %v389, 2
        %vm393 = vcmp.ge.s32.totalorder %v390, 2
        %vm394 = vcmp.ge.s32.totalorder %v391, 2
        %v395 = vld [vmem:[%s332] sm:$0x3]
        %v396 = vsel %vm392, 1, 0
        %v397 = vsel %vm393, 1, 0
        %v398 = vsel %vm394, 1, 0
        %vm399 = vcmp.eq.s32.totalorder %v396, 1
        %vm400 = vcmp.eq.s32.totalorder %v397, 1
        %vm401 = vcmp.eq.s32.totalorder %v398, 1
        %403 = vset.pattern.permute.xlu0 0
        %404 = vperm.xlu0 %403, %v395
        %v405 = vpop.permute.xlu0 %404
        %v407 = vsel %vm399, %v405, 1.0
        %v408 = vsel %vm400, %v405, 1.0
        %v409 = vsel %vm401, %v405, 1.0
        %v413 = vcombine.low %v407, %v408
        %v415 = vunpack.c.l.s4 1983009808
        %v416 = vunpack.c.0.s8 %v415
        %v417 = vlaneseq
        %v418 = vshrl.u32 %v417, 7
        %v419 = vsub.s32 %v416, %v418
        %v420 = vrot.slane %v413, %v419
        %v422 = vunpack.c.l.s4 1983009808
        %v423 = vunpack.c.0.s8 %v422
        %v424 = vlaneseq
        %v425 = vshrl.u32 %v424, 7
        %v426 = vsub.s32 %v423, %v425
        %v427 = vrot.slane %v409, %v426
        %v428 = vcombine.low %v420, %v427
        %v430 = vmul.f32 %v339, %v428
        %431 = vst [vmem:[%s325] sm:$0x3f] %v430
        %s432 = sand.u32 %s156, 1
        %s433 = scalar_lea.sflag [#allocation4], %s432
        %s434 = sand.u32 %s156, 1
        %s435 = smul.addr %s434, 6
        %s436 = scalar_lea.vmem [#allocation8], %s435
        // Predicated region
        $region49: #{tpu_custom_call.1} parent=35 // pred_check
          %p437 = pneg %p166
        $region50: #{tpu_custom_call.1} parent=35 // pred_check_branch
          %439 = sbr.rel (%p437) target = $region52
        $region51: #{tpu_custom_call.1} parent=35 // pred_region
          %s440 = smul.u32 3, %s29
          %s442 = ssub.s32 96, 96
          %443 = vsyncadd %s433, %s442
          %s444 = smul.addr %s28, 6
          %s445 = sadd.s32 %s440, %s444
          %s446 = smul.addr %s445, 32
          %s447 = scalar_lea.hbm %s4, %s446
          %s449 = sshll.u32 %s436, 4
          %s450 = int_to_ptr.vmem [resolvable:$true] %s449
          %452 = dma.vmem_to_hbm [thread:$0]  %s450, 96, %s447, %s433
        $region52: #{tpu_custom_call.1} parent=35 // pred_fallthru
          _
      $region36: #{tpu_custom_call.1} parent=5 // pred_fallthru
        _
      %p453 = scmp.le.s32.totalorder 2, %s19
      // Predicated region
      $region53: #{tpu_custom_call.1} parent=5 // pred_check
        %p454 = pneg %p453
      $region54: #{tpu_custom_call.1} parent=5 // pred_check_branch
        %456 = sbr.rel (%p454) target = $region56
      $region55: #{tpu_custom_call.1} parent=5 // pred_region
        %s457 = ssub.s32 %s19, 2
        // Predicated region
        $region57: #{tpu_custom_call.1} parent=55 // pred_check
          %p458 = pneg %p172
        $region58: #{tpu_custom_call.1} parent=55 // pred_check_branch
          %460 = sbr.rel (%p458) target = $region60
        $region59: #{tpu_custom_call.1} parent=55 // pred_region
          %s461 = sand.u32 %s157, 1
          %s462 = scalar_lea.sflag [#allocation4], %s461
          %s463 = sand.u32 %s157, 1
          %s464 = smul.addr %s463, 6
          %s465 = scalar_lea.vmem [#allocation8], %s464
          %466 = dma.done %s462, 96
        $region60: #{tpu_custom_call.1} parent=55 // pred_fallthru
          _
      $region56: #{tpu_custom_call.1} parent=5 // pred_fallthru
        _
    $region6: #{tpu_custom_call.1} parent=1 // loop_footer
      %s23 = sadd.s32 1, %s19
    $region7: #{tpu_custom_call.1} parent=1 // loop_footer_branch
      %18 = sbr.rel target = $region3
    $region8: #{tpu_custom_call.1} parent=1 // loop_exit
      _
    %467 = vsyncpa [#allocation3], 1
    %s468 = scalar_lea.sflag [#allocation3], 1
    %469 = vsyncpa %s468, 1
    %470 = vsyncpa [#allocation6], 1
    %s471 = scalar_lea.sflag [#allocation6], 1
    %472 = vsyncpa %s471, 1
    %473 = vsyncpa [#allocation4], 1
    %s474 = scalar_lea.sflag [#allocation4], 1
    %475 = vsyncpa %s474, 1

</llo_original>
